<compile_context>
chip_gen: v7x
topology: tpu7x:2x2x1
jax: 0.10.0
libtpu: 0.0.40
codegen_flags: <defaults>
</compile_context>

<pallas_src>
import functools
import math

import jax
import jax.numpy as jnp
from jax.experimental import pallas as pl
from jax.experimental.pallas import tpu as pltpu

_MIB = 1024 * 1024


# ---------------------------------------------------------------------------
# Kernel
# ---------------------------------------------------------------------------

def _segment_log_softmax(y, seg):
    """Exact LogSoftmax over contiguous lane segments of width `seg` of y.

    y: (rows, L) f32 with L a multiple of seg.  All cross-lane traffic runs on
    the XLU (rolls), which is otherwise idle in this kernel.  The in-segment
    masks are derived from a rolled segment-id array and both the max
    (idempotent) and the binary-decomposed sum only require a *consistent*
    shift direction, so the result is independent of pltpu.roll's convention.
    """
    L = y.shape[-1]
    lane = jax.lax.broadcasted_iota(jnp.int32, y.shape, dimension=1)
    seg_id = lane // seg
    mask_cache = {}

    def seg_shift(v, s):
        # Segment-cyclic shift by +/- s lanes (1 <= s < seg).
        if s not in mask_cache:
            mask_cache[s] = pltpu.roll(seg_id, shift=L - s, axis=1) == seg_id
        a = pltpu.roll(v, shift=L - s, axis=1)
        b = pltpu.roll(v, shift=seg - s, axis=1)
        return jnp.where(mask_cache[s], a, b)

    # Per-segment max via a cyclic butterfly (over-coverage is fine for max).
    m = y
    s = 1
    while s < seg:
        m = jnp.maximum(m, seg_shift(m, s))
        s *= 2
    z = y - m
    e = jnp.exp(z)

    # Exact per-segment sum: doubling partial sums + binary decomposition of
    # seg (handles non-power-of-two f_out such as 24).
    pieces = {1: e}
    w = 1
    while 2 * w <= seg:
        pieces[2 * w] = pieces[w] + seg_shift(pieces[w], w)
        w *= 2
    total = None
    offset = 0
    for width in sorted(pieces, reverse=True):
        if seg & width:
            part = pieces[width] if offset == 0 else seg_shift(pieces[width], offset)
            total = part if total is None else total + part
            offset += width
    return z - jnp.log(total)


def _linear_output_kernel(x_ref, w_ref, b_ref, o_ref, *, activation, seg):
    # x_ref: (tm, f_in_eff)  w_ref: (f_in_eff, f_out_eff)  b_ref: (1, f_out_eff)
    #
    # Tail-block note: the last grid step may compute on uninitialized padding
    # rows; every activation here is row/segment-local and Pallas masks the OOB
    # output writes, so garbage never reaches HBM.
    y = jnp.dot(x_ref[...], w_ref[...], preferred_element_type=jnp.float32)
    y = y + b_ref[...]  # bias broadcast over rows, in f32

    if activation == "sigmoid":
        out = jax.nn.sigmoid(y)
    elif activation == "softplus":
        out = jax.nn.softplus(y)
    elif activation == "softmax":
        if seg == y.shape[-1]:
            # Plain (unpacked) layout: whole f_out row lives in this block.
            m = jnp.max(y, axis=-1, keepdims=True)
            z = y - m
            out = z - jnp.log(jnp.sum(jnp.exp(z), axis=-1, keepdims=True))
        else:
            # Packed lane-dense layout: segmented LogSoftmax.
            out = _segment_log_softmax(y, seg)
    else:
        raise ValueError(f"unknown activation_type: {activation}")

    o_ref[...] = out.astype(o_ref.dtype)


# ---------------------------------------------------------------------------
# Tiling / packing heuristics
# ---------------------------------------------------------------------------

def _round_up(v, m):
    return -(-v // m) * m


def _physical_vmem_bytes():
    # Re-derive the VMEM cap per generation (v5e/v6e 128 MiB, v7x 64 MiB/TC).
    try:
        phys = int(pltpu.get_tpu_info().vmem_capacity_bytes)
        return min(max(phys, 32 * _MIB), 1024 * _MIB)
    except Exception:
        return 64 * _MIB  # conservative: v7x per-TensorCore VMEM


def _pick_tiling(rows, bytes_per_row, w_bytes):
    """(block_rows, vmem_limit_bytes): large aligned row tiles, an even grid of
    >= 2 steps when there is enough work (v7x 2-TC balance), sized from the
    chip's physical VMEM with an explicit scoped limit."""
    phys = _physical_vmem_bytes()
    vmem_limit = int(min(phys // 2, 40 * _MIB))
    # x/out tiles are double-buffered by the pipeline; W/b are resident but
    # still counted twice (default double buffering), plus ~4 MiB slack.
    # TODO(synk): pipeline_mode=pl.Buffered(1) on the W/b specs would free the
    # second weight buffer once single-buffering is exercised in this tree.
    step_budget = (vmem_limit - 2 * w_bytes - 4 * _MIB) // 2
    step_budget = int(max(1 * _MIB, min(step_budget, 8 * _MIB)))
    align = 8
    tm = max(align, (step_budget // max(bytes_per_row, 1)) // align * align)
    if rows <= 2 * align:
        return rows, vmem_limit                       # tiny: one full block
    # At least 2 grid steps so the "parallel" row axis shards across v7x's TCs.
    tm = min(tm, _round_up(pl.cdiv(rows, 2), align))
    grid = pl.cdiv(rows, tm)
    if grid % 2:                                      # even grid: 2-TC balance
        tm = min(tm, _round_up(pl.cdiv(rows, grid + 1), align))
    return tm, vmem_limit


def _choose_pack_factor(f_in, f_out, rows, in_itemsize, out_itemsize):
    """Smallest k with (k*f_out) % 128 == 0 (gcd-based), optionally doubled to
    a 256-lane multiple for the v6e/v7x MXU when that keeps the kernel clearly
    HBM-bound; gated on k | rows and a cap on the block-diagonal weight."""
    if f_out <= 0:
        return 1
    k_min = 128 // math.gcd(f_out, 128)
    if k_min == 1:
        return 1  # f_out already a multiple of 128 lanes

    def ok(k, check_intensity):
        if rows % k or (k * f_in) * (k * f_out) * in_itemsize > 2 * _MIB:
            return False
        if check_intensity:
            # Block-diag packing inflates matmul flops by k; only take the
            # wider candidate if arithmetic intensity stays HBM-bound even for
            # f32 on v5e / high-bandwidth v7x.
            fpb = (2.0 * k * f_in * f_out) / (f_in * in_itemsize + f_out * out_itemsize)
            if fpb > 64.0:
                return False
        return True

    if (k_min * f_out) % 256 and ok(2 * k_min, True):
        return 2 * k_min
    if ok(k_min, False):
        return k_min
    return 1


# ---------------------------------------------------------------------------
# Pallas call wrapper
# ---------------------------------------------------------------------------

@functools.partial(jax.jit, static_argnames=("activation", "k", "f_out", "out_dtype"))
def _linear_output_call(x2, w_in, b_in, *, activation, k, f_out, out_dtype):
    M, f_in = x2.shape
    assert M % k == 0
    rows = M // k
    f_in_eff, f_out_eff = k * f_in, k * f_out
    # Row-major bitcast: packs k logical rows into one lane-dense physical row.
    x_in = x2.reshape(rows, f_in_eff) if k > 1 else x2

    out_dt = jnp.dtype(out_dtype)
    bytes_per_row = f_in_eff * x_in.dtype.itemsize + f_out_eff * out_dt.itemsize
    w_bytes = int(w_in.size) * w_in.dtype.itemsize
    tm, vmem_limit = _pick_tiling(rows, bytes_per_row, w_bytes)
    grid = pl.cdiv(rows, tm)  # no jnp.pad: partial tail block handled by masking

    # TODO(synk): if f_in*f_out ever becomes multi-MiB, add a K grid axis with a
    # VMEM f32 accumulator (pl.when init/finalize) instead of one resident weight.

    cost = pl.CostEstimate(
        flops=2 * M * f_in * f_out,          # logical work, not block-diag-inflated
        transcendentals=2 * M * f_out,       # exp + recip/log1p per output element
        bytes_accessed=int(
            x_in.size * x_in.dtype.itemsize
            + w_bytes
            + b_in.size * b_in.dtype.itemsize
            + rows * f_out_eff * out_dt.itemsize
        ),
    )

    kernel = functools.partial(_linear_output_kernel, activation=activation, seg=f_out)

    out = pl.pallas_call(
        kernel,
        out_shape=jax.ShapeDtypeStruct((rows, f_out_eff), out_dt),
        grid=(grid,),
        in_specs=[
            pl.BlockSpec((tm, f_in_eff), lambda i: (i, 0)),
            pl.BlockSpec((f_in_eff, f_out_eff), lambda i: (0, 0)),
            pl.BlockSpec((1, f_out_eff), lambda i: (0, 0)),
        ],
        out_specs=pl.BlockSpec((tm, f_out_eff), lambda i: (i, 0)),
        compiler_params=pltpu.CompilerParams(
            dimension_semantics=("parallel",),
            vmem_limit_bytes=int(vmem_limit),
        ),
        cost_estimate=cost,
    )(x_in, w_in, b_in)

    return out.reshape(M, f_out)


class LinearOutputPallas:
    """Eval-mode LinearOutput: activation(x @ W + b).

    w: (f_in, f_out) -- already transposed vs torch's (out, in); b: (f_out,).
    The compute dtype follows x's dtype (pass bf16 activations for the bf16
    fast path -- no wrapper-side cast of x is performed).  Packed weights are
    precomputed once and cached, off the per-call jit path.
    """

    # TODO(synk): training-mode dropout (p=0.15) could use pltpu.prng_* but
    # cannot match torch's RNG stream; eval-mode dropout is the identity.

    def __init__(self, w, b, activation_type="sigmoid", out_dtype=None):
        if activation_type not in ("sigmoid", "softmax", "softplus"):
            raise ValueError(f"unknown activation_type: {activation_type}")
        self.w = jnp.asarray(w)
        self.b32 = jnp.asarray(b).astype(jnp.float32)
        self.f_in, self.f_out = self.w.shape
        self.activation_type = activation_type
        self.out_dtype = out_dtype
        self._packed = {}  # (k, compute_dtype_name) -> (w_in, b_in)

    def _packed_params(self, k, dtype):
        key = (k, jnp.dtype(dtype).name)
        if key not in self._packed:
            w = self.w.astype(dtype)
            if k == 1:
                w_in = w
                b_in = self.b32.reshape(1, self.f_out)
            else:
                w_in = jnp.kron(jnp.eye(k, dtype=w.dtype), w)        # block-diag
                b_in = jnp.tile(self.b32, k).reshape(1, k * self.f_out)
            self._packed[key] = (jax.device_put(w_in), jax.device_put(b_in))
        return self._packed[key]

    def __call__(self, x):
        lead = x.shape[:-1]
        f_in = x.shape[-1]
        assert f_in == self.f_in
        M = 1
        for d in lead:
            M *= d
        out_dtype = self.out_dtype if self.out_dtype is not None else x.dtype
        k = _choose_pack_factor(
            f_in, self.f_out, M,
            jnp.dtype(x.dtype).itemsize, jnp.dtype(out_dtype).itemsize)
        w_in, b_in = self._packed_params(k, x.dtype)
        out2 = _linear_output_call(
            x.reshape(M, f_in), w_in, b_in,
            activation=self.activation_type, k=k, f_out=self.f_out,
            out_dtype=jnp.dtype(out_dtype).name)
        return out2.reshape(lead + (self.f_out,))


def linear_output(x, w, b, activation_type="sigmoid", out_dtype=None):
    """One-off convenience wrapper (prefer LinearOutputPallas for reuse)."""
    return LinearOutputPallas(w, b, activation_type, out_dtype)(x)


# ---------------------------------------------------------------------------
# Reference + test harness
# ---------------------------------------------------------------------------

def _reference(x, w, b, activation_type):
    y = jnp.einsum("btf,fo->bto", x.astype(jnp.float32), w) + b
    if activation_type == "sigmoid":
        return jax.nn.sigmoid(y)
    if activation_type == "softmax":
        return jax.nn.log_softmax(y, axis=2)
    return jax.nn.softplus(y)


def _make_inputs(key, B, T, f_in, f_out):
    kx, kw, kb = jax.random.split(key, 3)
    x = jax.random.normal(kx, (B, T, f_in), dtype=jnp.float32)
    # nn.Linear default init: U(-1/sqrt(in_features), 1/sqrt(in_features))
    bound = 1.0 / (f_in ** 0.5)
    w = jax.random.uniform(kw, (f_in, f_out), minval=-bound, maxval=bound,
                           dtype=jnp.float32)
    b = jax.random.uniform(kb, (f_out,), minval=-bound, maxval=bound,
                           dtype=jnp.float32)
    return x, w, b


if __name__ == "__main__":
    ok = True
    root = jax.random.PRNGKey(0)

    # (B, T, f_in, f_out):
    #   case 0: tiny single block, packed (k=8)
    #   case 1: multi-step grid with partial tail block, packed (k=8)
    #   case 2: plain fallback (M not divisible by k_min=16), narrow layout
    #   case 3: packed with non-power-of-two f_out=24 (k=16, 384 dense lanes)
    cases = [(2, 8, 32, 16), (4, 100, 32, 16), (3, 67, 40, 24), (2, 96, 40, 24)]
    for idx, (B, T, F_IN, F_OUT) in enumerate(cases):
        x, w, b = _make_inputs(jax.random.fold_in(root, idx), B, T, F_IN, F_OUT)
        for act in ("sigmoid", "softmax", "softplus"):
            mod = LinearOutputPallas(w, b, activation_type=act)
            out = jax.block_until_ready(mod(x))
            ref = _reference(x, w, b, act)
            if out.shape != (B, T, F_OUT):
                ok = False
            if not jnp.allclose(out, ref, atol=1e-5, rtol=1e-5):
                ok = False

    # bf16 fast path: caller supplies bf16 activations; W is cast once at
    # prepare time, accumulation and activation stay f32 in-kernel.
    x, w, b = _make_inputs(jax.random.fold_in(root, 100), 4, 100, 32, 16)
    mod = LinearOutputPallas(w, b, activation_type="sigmoid", out_dtype=jnp.float32)
    out = jax.block_until_ready(mod(x.astype(jnp.bfloat16)))
    if not jnp.allclose(out, _reference(x, w, b, "sigmoid"), atol=5e-2):
        ok = False

    if ok:
        print("KERNEL_OK")
</pallas_src>

<mosaic_0001>
module attributes {stable_mosaic.version = 11 : i64} {
  func.func @_linear_output_kernel(%arg0: i32, %arg1: memref<2x256xf32, #tpu.memory_space<vmem>>, %arg2: memref<256x128xf32, #tpu.memory_space<vmem>>, %arg3: memref<1x128xf32, #tpu.memory_space<vmem>>, %arg4: memref<2x128xf32, #tpu.memory_space<vmem>>) attributes {dimension_semantics = [#tpu.dimension_semantics<parallel>], iteration_bounds = array<i64: 1>, scalar_prefetch = 0 : i64, scratch_operands = 0 : i64, tpu.core_type = #tpu.core_type<tc>, window_params = [{transform_indices = @transform_0, window_bounds = array<i64: 2, 256>}, {pipeline_mode = #tpu.pipeline_mode<synchronous>, transform_indices = @transform_1, window_bounds = array<i64: 256, 128>}, {pipeline_mode = #tpu.pipeline_mode<synchronous>, transform_indices = @transform_2, window_bounds = array<i64: 1, 128>}, {transform_indices = @transform_3, window_bounds = array<i64: 2, 128>}]} {
    %c0 = arith.constant 0 : index
    %c0_0 = arith.constant 0 : index
    %0 = vector.load %arg1[%c0, %c0_0] : memref<2x256xf32, #tpu.memory_space<vmem>>, vector<2x256xf32>
    %c0_1 = arith.constant 0 : index
    %c0_2 = arith.constant 0 : index
    %1 = vector.load %arg2[%c0_1, %c0_2] : memref<256x128xf32, #tpu.memory_space<vmem>>, vector<256x128xf32>
    %cst = arith.constant dense<0.000000e+00> : vector<2x128xf32>
    %2 = tpu.matmul %0, %1, %cst {dimension_numbers = #tpu.dot_dimension_numbers<[1], [0], [0], [1], [0, 0, 1, 1], [], []>} : vector<2x256xf32>, vector<256x128xf32>, vector<2x128xf32> -> vector<2x128xf32>
    %c0_3 = arith.constant 0 : index
    %c0_4 = arith.constant 0 : index
    %3 = vector.load %arg3[%c0_3, %c0_4] : memref<1x128xf32, #tpu.memory_space<vmem>>, vector<1x128xf32>
    %4 = vector.broadcast %3 : vector<1x128xf32> to vector<2x128xf32>
    %5 = arith.addf %2, %4 : vector<2x128xf32>
    %6 = arith.negf %5 : vector<2x128xf32>
    %7 = math.exp %6 : vector<2x128xf32>
    %cst_5 = arith.constant 1.000000e+00 : f32
    %8 = vector.broadcast %cst_5 : f32 to vector<2x128xf32>
    %9 = arith.addf %8, %7 : vector<2x128xf32>
    %10 = arith.divf %8, %9 : vector<2x128xf32>
    %c0_6 = arith.constant 0 : index
    %c0_7 = arith.constant 0 : index
    %11 = vector.load %arg4[%c0_6, %c0_7] : memref<2x128xf32, #tpu.memory_space<vmem>>, vector<2x128xf32>
    tpu.vector_store %arg4[%c0_6, %c0_7], %10 {strides = array<i32>} : memref<2x128xf32, #tpu.memory_space<vmem>>, vector<2x128xf32>,
    return
  }
  func.func @transform_0(%arg0: i32) -> (i32, i32) {
    %c0_i32 = arith.constant 0 : i32
    %c0_i32_0 = arith.constant 0 : i32
    return %arg0, %c0_i32 : i32, i32
  }
  func.func @transform_1(%arg0: i32) -> (i32, i32) {
    %c0_i32 = arith.constant 0 : i32
    %c0_i32_0 = arith.constant 0 : i32
    %c0_i32_1 = arith.constant 0 : i32
    return %c0_i32, %c0_i32_0 : i32, i32
  }
  func.func @transform_2(%arg0: i32) -> (i32, i32) {
    %c0_i32 = arith.constant 0 : i32
    %c0_i32_0 = arith.constant 0 : i32
    %c0_i32_1 = arith.constant 0 : i32
    return %c0_i32, %c0_i32_0 : i32, i32
  }
  func.func @transform_3(%arg0: i32) -> (i32, i32) {
    %c0_i32 = arith.constant 0 : i32
    %c0_i32_0 = arith.constant 0 : i32
    return %arg0, %c0_i32 : i32, i32
  }
}

</mosaic_0001>

<llo_original>
// kernel: _linear_output_call.1
$region0: #{_linear_output_call.1}
  #allocation0 [shape = 'u32[]', space=smem, size = 0x4, offset = 0x4, fixed_abs, tag = 'smem constant byte address 0x4 - core index']
  #allocation1 [shape = 'u32[144,128]{1,0:T(1,128)}', space=vmem, size = 0x12000, scoped, tag = 'internal scratch']
  %s0 = inlined_call_operand.vmem [shape: f32[2,256], index: 0, kind: input, shape index: {}]
  %s1 = inlined_call_operand.hbm [shape: f32[256,128], index: 1, kind: input, shape index: {}]
  %s2 = inlined_call_operand.vmem [shape: f32[1,128], index: 2, kind: input, shape index: {}]
  %s3 = inlined_call_operand.vmem [shape: f32[2,128], index: 3, kind: output, shape index: {}]
  %s4 = sld [smem:[#allocation0]]
  $region26: #{_linear_output_call.1} parent=0
    _
  %s6 = ssub.s32 1, %s4
  %s7 = scalar_select 0, %s6, %s4
  $region1: #{_linear_output_call.1} parent=0
    #allocation2 [shape = 'u8[131072]{0}', space=vmem, size = 0x20000, scoped, tag = 'input window, operand 1, single buffered']
    #allocation3 [shape = 's32[1]{0}', space=sflag, size = 0x4, scoped, tag = 'scoped memory for _linear_output_call.1']
    %8 = vsyncpa [#allocation3], 0
    // Predicated region
    $region2: #{_linear_output_call.1} parent=1 // pred_check
      _
    $region3: #{_linear_output_call.1} parent=1 // pred_check_branch
      %10 = sbr.rel (0) target = $region5
    $region4: #{_linear_output_call.1} parent=1 // pred_region
      _
    $region5: #{_linear_output_call.1} parent=1 // pred_fallthru
      _
    // Predicated region
    $region6: #{_linear_output_call.1} parent=1 // pred_check
      _
    $region7: #{_linear_output_call.1} parent=1 // pred_check_branch
      %12 = sbr.rel (0) target = $region9
    $region8: #{_linear_output_call.1} parent=1 // pred_region
      %s14 = ssub.s32 4096, 4096
      %15 = vsyncadd [#allocation3], %s14
      %s16 = sshll.u32 [#allocation2], 4
      %s17 = int_to_ptr.vmem [resolvable:$true] %s16
      %22 = dma.hbm_to_vmem [thread:$0]  %s1, 4096, %s17, [#allocation3], 128, 128, 8
    $region9: #{_linear_output_call.1} parent=1 // pred_fallthru
      _
    // Predicated region
    $region10: #{_linear_output_call.1} parent=1 // pred_check
      _
    $region11: #{_linear_output_call.1} parent=1 // pred_check_branch
      %24 = sbr.rel (0) target = $region13
    $region12: #{_linear_output_call.1} parent=1 // pred_region
      _
    $region13: #{_linear_output_call.1} parent=1 // pred_fallthru
      _
    // Predicated region
    $region14: #{_linear_output_call.1} parent=1 // pred_check
      _
    $region15: #{_linear_output_call.1} parent=1 // pred_check_branch
      %26 = sbr.rel (0) target = $region17
    $region16: #{_linear_output_call.1} parent=1 // pred_region
      %27 = dma.done [#allocation3], 4096
    $region17: #{_linear_output_call.1} parent=1 // pred_fallthru
      _
    %v28 = vld [vmem:[%s0] sm:$0xf]
    %v29 = vld [vmem:[#allocation2] sm:$0xff]
    %v30 = vld [vmem:[#allocation2 + $0x8] sm:$0xff]
    %v31 = vld [vmem:[#allocation2 + $0x10] sm:$0xff]
    %v32 = vld [vmem:[#allocation2 + $0x18] sm:$0xff]
    %v33 = vld [vmem:[#allocation2 + $0x20] sm:$0xff]
    %v34 = vld [vmem:[#allocation2 + $0x28] sm:$0xff]
    %v35 = vld [vmem:[#allocation2 + $0x30] sm:$0xff]
    %v36 = vld [vmem:[#allocation2 + $0x38] sm:$0xff]
    %v37 = vld [vmem:[#allocation2 + $0x40] sm:$0xff]
    %v38 = vld [vmem:[#allocation2 + $0x48] sm:$0xff]
    %v39 = vld [vmem:[#allocation2 + $0x50] sm:$0xff]
    %v40 = vld [vmem:[#allocation2 + $0x58] sm:$0xff]
    %v41 = vld [vmem:[#allocation2 + $0x60] sm:$0xff]
    %v42 = vld [vmem:[#allocation2 + $0x68] sm:$0xff]
    %v43 = vld [vmem:[#allocation2 + $0x70] sm:$0xff]
    %v44 = vld [vmem:[#allocation2 + $0x78] sm:$0xff]
    %v45 = vld [vmem:[#allocation2 + $0x80] sm:$0xff]
    %v46 = vld [vmem:[#allocation2 + $0x88] sm:$0xff]
    %v47 = vld [vmem:[#allocation2 + $0x90] sm:$0xff]
    %v48 = vld [vmem:[#allocation2 + $0x98] sm:$0xff]
    %v49 = vld [vmem:[#allocation2 + $0xa0] sm:$0xff]
    %v50 = vld [vmem:[#allocation2 + $0xa8] sm:$0xff]
    %v51 = vld [vmem:[#allocation2 + $0xb0] sm:$0xff]
    %v52 = vld [vmem:[#allocation2 + $0xb8] sm:$0xff]
    %v53 = vld [vmem:[#allocation2 + $0xc0] sm:$0xff]
    %v54 = vld [vmem:[#allocation2 + $0xc8] sm:$0xff]
    %v55 = vld [vmem:[#allocation2 + $0xd0] sm:$0xff]
    %v56 = vld [vmem:[#allocation2 + $0xd8] sm:$0xff]
    %v57 = vld [vmem:[#allocation2 + $0xe0] sm:$0xff]
    %v58 = vld [vmem:[#allocation2 + $0xe8] sm:$0xff]
    %v59 = vld [vmem:[#allocation2 + $0xf0] sm:$0xff]
    %v60 = vld [vmem:[#allocation2 + $0xf8] sm:$0xff]
    %v61 = vld [vmem:[%s2] sm:$0x1]
    %v63 = vlaneseq
    %v64 = vshrl.u32 %v63, 7
    %v65 = vsub.s32 0, %v64
    %v66 = vrot.slane %v61, %v65
    %v70 = vunpack.c.l.s4 1983009808
    %v71 = vunpack.c.0.s8 %v70
    %v72 = vlaneseq
    %v73 = vshrl.u32 %v72, 7
    %v74 = vsub.s32 %v71, %v73
    %v75 = vrot.slane %v28, %v74
    %v76 = vcombine.high %v75, %v75
    %79 = vmatprep.subr.mxu0 0.0
    %80 = vmatpush1.msra.mxu0 %v29
    %81 = vmatprep.subr.mxu0 0.0
    %82 = vmatpush1.msra.mxu0 %v30
    %83 = vmatprep.subr.mxu0 0.0
    %84 = vmatpush1.msra.mxu0 %v31
    %85 = vmatprep.subr.mxu0 0.0
    %86 = vmatpush1.msra.mxu0 %v32
    %87 = vmatprep.subr.mxu0 0.0
    %88 = vmatpush1.msra.mxu0 %v33
    %89 = vmatprep.subr.mxu0 0.0
    %90 = vmatpush1.msra.mxu0 %v34
    %91 = vmatprep.subr.mxu0 0.0
    %92 = vmatpush1.msra.mxu0 %v35
    %93 = vmatprep.subr.mxu0 0.0
    %94 = vmatpush1.msra.mxu0 %v36
    %95 = vmatprep.subr.mxu0 0.0
    %96 = vmatpush1.msra.mxu0 %v37
    %97 = vmatprep.subr.mxu0 0.0
    %98 = vmatpush1.msra.mxu0 %v38
    %99 = vmatprep.subr.mxu0 0.0
    %100 = vmatpush1.msra.mxu0 %v39
    %101 = vmatprep.subr.mxu0 0.0
    %102 = vmatpush1.msra.mxu0 %v40
    %103 = vmatprep.subr.mxu0 0.0
    %104 = vmatpush1.msra.mxu0 %v41
    %105 = vmatprep.subr.mxu0 0.0
    %106 = vmatpush1.msra.mxu0 %v42
    %107 = vmatprep.subr.mxu0 0.0
    %108 = vmatpush1.msra.mxu0 %v43
    %109 = vmatprep.subr.mxu0 0.0
    %110 = vmatpush1.msra.mxu0 %v44
    %111 = vmatprep.subr.mxu0 0.0
    %112 = vmatpush1.msra.mxu0 %v45
    %113 = vmatprep.subr.mxu0 0.0
    %114 = vmatpush1.msra.mxu0 %v46
    %115 = vmatprep.subr.mxu0 0.0
    %116 = vmatpush1.msra.mxu0 %v47
    %117 = vmatprep.subr.mxu0 0.0
    %118 = vmatpush1.msra.mxu0 %v48
    %119 = vmatprep.subr.mxu0 0.0
    %120 = vmatpush1.msra.mxu0 %v49
    %121 = vmatprep.subr.mxu0 0.0
    %122 = vmatpush1.msra.mxu0 %v50
    %123 = vmatprep.subr.mxu0 0.0
    %124 = vmatpush1.msra.mxu0 %v51
    %125 = vmatprep.subr.mxu0 0.0
    %126 = vmatpush1.msra.mxu0 %v52
    %127 = vmatprep.subr.mxu0 0.0
    %128 = vmatpush1.msra.mxu0 %v53
    %129 = vmatprep.subr.mxu0 0.0
    %130 = vmatpush1.msra.mxu0 %v54
    %131 = vmatprep.subr.mxu0 0.0
    %132 = vmatpush1.msra.mxu0 %v55
    %133 = vmatprep.subr.mxu0 0.0
    %134 = vmatpush1.msra.mxu0 %v56
    %135 = vmatprep.subr.mxu0 0.0
    %136 = vmatpush1.msra.mxu0 %v57
    %137 = vmatprep.subr.mxu0 0.0
    %138 = vmatpush1.msra.mxu0 %v58
    %139 = vmatprep.subr.mxu0 0.0
    %140 = vmatpush1.msra.mxu0 %v59
    %141 = vmatprep.subr.mxu0 0.0
    %142 = vmatpush1.msra.mxu0 %v60
    %143 = vmatprep.mubr.f32.mxu0 %v76
    %144 = vmatmul.mubr.f32.gmra.mrb[0].mxu0 %v75
    %v145 = vpop.f32.mrb[0].mxu0
    %v146 = vadd.f32 %v66, %v145
    %v147 = vpop.f32.mrb[0].mxu0
    %148 = vdwg.mxu0
    %v149 = vxor.u32 %v146, 2147483648
    %v150 = vmul.f32 %v149, 1.442695
    %v151 = vpow.pop %v150
    %v152 = vadd.f32 %v151, 1.0
    %v153 = vrcp.pop %v152
    %v154 = vmul.f32 1.0, %v153
    %155 = vst [vmem:[%s3] sm:$0x3] %v154
    // Predicated region
    $region18: #{_linear_output_call.1} parent=1 // pred_check
      _
    $region19: #{_linear_output_call.1} parent=1 // pred_check_branch
      %157 = sbr.rel (0) target = $region21
    $region20: #{_linear_output_call.1} parent=1 // pred_region
      _
    $region21: #{_linear_output_call.1} parent=1 // pred_fallthru
      _
    // Predicated region
    $region22: #{_linear_output_call.1} parent=1 // pred_check
      _
    $region23: #{_linear_output_call.1} parent=1 // pred_check_branch
      %159 = sbr.rel (0) target = $region25
    $region24: #{_linear_output_call.1} parent=1 // pred_region
      _
    $region25: #{_linear_output_call.1} parent=1 // pred_fallthru
      _
    %160 = vsyncpa [#allocation3], 1

</llo_original>
